<compile_context>
chip_gen: v7x
topology: tpu7x:2x2x1
jax: 0.10.0
libtpu: 0.0.40
codegen_flags: <defaults>
</compile_context>

<pallas_src>
import jax
import jax.numpy as jnp
from jax.experimental import pallas as pl
from jax.experimental.pallas import tpu as pltpu


_MIN_PALLAS_ELEMS = 1024            # below this, launch/DMA overhead dominates
_TARGET_BLOCK_ELEMS = 256 * 1024    # ~1 MiB per f32 block (x4 buffers = 4 MiB)
_LANE_CANDIDATES = (2048, 1024, 512, 256, 128)


def _bf16_native_compute_ok():
    # v6e / v7x have bf16 VPU + EUP; v5e and older do not -> f32 compute there.
    try:
        kind = jax.devices()[0].device_kind.lower()
    except Exception:
        return False
    return not any(v in kind for v in ("v2", "v3", "v4", "v5"))


_BF16_NATIVE_COMPUTE = _bf16_native_compute_ok()


def _sigmoid_kernel(x_ref, o_ref):
    x = x_ref[...]
    if x.dtype == jnp.bfloat16 and _BF16_NATIVE_COMPUTE:
        cd = jnp.bfloat16
    else:
        cd = jnp.float32
    xc = x.astype(cd)
    # sigmoid(x) = 1/(1+exp(-x)) = 0.5*(tanh(x/2)+1); tanh runs on the EUP
    # slot and avoids a VPU divide / Newton refinement.
    y = 0.5 * (jnp.tanh(0.5 * xc) + 1.0)
    o_ref[...] = y.astype(o_ref.dtype)


def _pick_layout(n):
    """Widest lane-dense (rows, lanes) exact factorization of n (no padding)."""
    best = (None, None)
    for lanes in _LANE_CANDIDATES:
        if n % lanes:
            continue
        rows = n // lanes
        if rows % 8 == 0:
            return rows, lanes          # widest lanes with 8-aligned rows
        if best[0] is None:
            best = (rows, lanes)        # widest exact factorization (rows < 8)
    return best


def _run_sigmoid_2d(slab, donate_input=False):
    rows, lanes = slab.shape
    cap_rows = max(8, (_TARGET_BLOCK_ELEMS // lanes) // 8 * 8)
    block_rows = min(rows, cap_rows)    # either full rows or a multiple of 8
    grid = (pl.cdiv(rows, block_rows),)

    kwargs = {}
    if donate_input:
        # Reuse the input HBM buffer for the output (same shape/dtype).
        kwargs["input_output_aliases"] = {0: 0}

    return pl.pallas_call(
        _sigmoid_kernel,
        out_shape=jax.ShapeDtypeStruct((rows, lanes), slab.dtype),
        grid=grid,
        in_specs=[pl.BlockSpec((block_rows, lanes), lambda i: (i, 0))],
        out_specs=pl.BlockSpec((block_rows, lanes), lambda i: (i, 0)),
        compiler_params=pltpu.CompilerParams(
            # Independent blocks -> shard grid across TensorCores (v7x).
            dimension_semantics=("parallel",),
            # Comfortable headroom under v7x's 64 MiB physical VMEM.
            vmem_limit_bytes=32 * 1024 * 1024,
        ),
        **kwargs,
    )(slab)


def xiayu_forward(x, *, donate_input=False):
    """Elementwise sigmoid via a Pallas TPU kernel. Any shape / float dtype."""
    orig_shape = x.shape
    n = x.size
    if n == 0:
        return x
    if n < _MIN_PALLAS_ELEMS:
        # Tiny input: a kernel launch is pure overhead.
        return jax.nn.sigmoid(x)

    rows, lanes = _pick_layout(n)
    if rows is not None:
        # Zero-copy path: pure reshape to a lane-dense slab, no pad/slice.
        slab = x.reshape(rows, lanes)
        out = _run_sigmoid_2d(slab, donate_input)
        return out.reshape(orig_shape)

    # Generic fallback: flatten + pad to an 8x512-aligned slab, slice back.
    lanes = 512
    rows = ((pl.cdiv(n, lanes) + 7) // 8) * 8
    padded = rows * lanes
    flat = jnp.pad(jnp.ravel(x), (0, padded - n))
    out = _run_sigmoid_2d(flat.reshape(rows, lanes))
    return out.reshape(padded)[:n].reshape(orig_shape)


if __name__ == "__main__":
    key = jax.random.PRNGKey(0)
    key_big, key_small = jax.random.split(key)

    # The reference script reshapes its input to (-1, 1, 2, 2).
    x = jax.random.normal(key_big, (2048, 1, 2, 2), dtype=jnp.float32)
    out = jax.block_until_ready(xiayu_forward(x))

    ref = jax.nn.sigmoid(x)
    assert out.shape == x.shape and out.dtype == x.dtype
    assert jnp.allclose(out, ref, atol=1e-5, rtol=1e-5), "mismatch vs reference sigmoid"

    # Tiny-input path (the literal toy example shape) bypasses the kernel.
    x_small = jax.random.normal(key_small, (2, 1, 2, 2), dtype=jnp.float32)
    out_small = jax.block_until_ready(xiayu_forward(x_small))
    assert jnp.allclose(out_small, jax.nn.sigmoid(x_small), atol=1e-5)

    print("KERNEL_OK")
</pallas_src>

<mosaic_0001>
module attributes {stable_mosaic.version = 11 : i64} {
  func.func @_sigmoid_kernel(%arg0: i32, %arg1: memref<8x1024xf32, #tpu.memory_space<vmem>>, %arg2: memref<8x1024xf32, #tpu.memory_space<vmem>>) attributes {dimension_semantics = [#tpu.dimension_semantics<parallel>], iteration_bounds = array<i64: 1>, scalar_prefetch = 0 : i64, scratch_operands = 0 : i64, tpu.core_type = #tpu.core_type<tc>, window_params = [{transform_indices = @transform_0, window_bounds = array<i64: 8, 1024>}, {transform_indices = @transform_1, window_bounds = array<i64: 8, 1024>}]} {
    %c0 = arith.constant 0 : index
    %c0_0 = arith.constant 0 : index
    %0 = vector.load %arg1[%c0, %c0_0] : memref<8x1024xf32, #tpu.memory_space<vmem>>, vector<8x1024xf32>
    %cst = arith.constant 5.000000e-01 : f32
    %1 = vector.broadcast %cst : f32 to vector<8x1024xf32>
    %2 = arith.mulf %1, %0 : vector<8x1024xf32>
    %3 = math.tanh %2 : vector<8x1024xf32>
    %cst_1 = arith.constant 1.000000e+00 : f32
    %4 = vector.broadcast %cst_1 : f32 to vector<8x1024xf32>
    %5 = arith.addf %3, %4 : vector<8x1024xf32>
    %cst_2 = arith.constant 5.000000e-01 : f32
    %6 = vector.broadcast %cst_2 : f32 to vector<8x1024xf32>
    %7 = arith.mulf %6, %5 : vector<8x1024xf32>
    %c0_3 = arith.constant 0 : index
    %c0_4 = arith.constant 0 : index
    %8 = vector.load %arg2[%c0_3, %c0_4] : memref<8x1024xf32, #tpu.memory_space<vmem>>, vector<8x1024xf32>
    tpu.vector_store %arg2[%c0_3, %c0_4], %7 {strides = array<i32>} : memref<8x1024xf32, #tpu.memory_space<vmem>>, vector<8x1024xf32>,
    return
  }
  func.func @transform_0(%arg0: i32) -> (i32, i32) {
    %c0_i32 = arith.constant 0 : i32
    %c0_i32_0 = arith.constant 0 : i32
    return %arg0, %c0_i32 : i32, i32
  }
  func.func @transform_1(%arg0: i32) -> (i32, i32) {
    %c0_i32 = arith.constant 0 : i32
    %c0_i32_0 = arith.constant 0 : i32
    return %arg0, %c0_i32 : i32, i32
  }
}

</mosaic_0001>

<llo_original>
// kernel: tpu_custom_call.1
$region0: #{tpu_custom_call.1}
  #allocation0 [shape = 'u32[]', space=smem, size = 0x4, offset = 0x4, fixed_abs, tag = 'smem constant byte address 0x4 - core index']
  #allocation1 [shape = 'u32[144,128]{1,0:T(1,128)}', space=vmem, size = 0x12000, scoped, tag = 'internal scratch']
  %s0 = inlined_call_operand.hbm [shape: f32[8,1024], index: 0, kind: input, shape index: {}]
  %s1 = inlined_call_operand.hbm [shape: f32[8,1024], index: 1, kind: output, shape index: {}]
  %s2 = sld [smem:[#allocation0]]
  $region18: #{tpu_custom_call.1} parent=0
    _
  %s4 = ssub.s32 1, %s2
  %s5 = scalar_select 0, %s4, %s2
  $region1: #{tpu_custom_call.1} parent=0
    #allocation2 [shape = 'u8[32768]{0}', space=vmem, size = 0x8000, scoped, tag = 'input window, operand 0, single buffered']
    #allocation3 [shape = 's32[1]{0}', space=sflag, size = 0x4, scoped, tag = 'scoped memory for tpu_custom_call.1']
    #allocation4 [shape = 's32[1]{0}', space=sflag, size = 0x4, scoped, tag = 'scoped memory for tpu_custom_call.1']
    #allocation5 [shape = 'u8[32768]{0}', space=vmem, size = 0x8000, scoped, tag = 'output window, operand 0, single buffered']
    %6 = vsyncpa [#allocation3], 0
    %7 = vsyncpa [#allocation4], 0
    // Predicated region
    $region2: #{tpu_custom_call.1} parent=1 // pred_check
      _
    $region3: #{tpu_custom_call.1} parent=1 // pred_check_branch
      %9 = sbr.rel (0) target = $region5
    $region4: #{tpu_custom_call.1} parent=1 // pred_region
      %s11 = ssub.s32 1024, 1024
      %12 = vsyncadd [#allocation3], %s11
      %s14 = sshll.u32 [#allocation2], 4
      %s15 = int_to_ptr.vmem [resolvable:$true] %s14
      %17 = dma.hbm_to_vmem [thread:$0]  %s0, 1024, %s15, [#allocation3]
    $region5: #{tpu_custom_call.1} parent=1 // pred_fallthru
      _
    // Predicated region
    $region6: #{tpu_custom_call.1} parent=1 // pred_check
      _
    $region7: #{tpu_custom_call.1} parent=1 // pred_check_branch
      %19 = sbr.rel (0) target = $region9
    $region8: #{tpu_custom_call.1} parent=1 // pred_region
      %20 = dma.done [#allocation3], 1024
    $region9: #{tpu_custom_call.1} parent=1 // pred_fallthru
      _
    %v21 = vld [vmem:[#allocation2] sm:$0xff]
    %v22 = vld [vmem:[#allocation2 + $0x8] sm:$0xff]
    %v23 = vld [vmem:[#allocation2 + $0x10] sm:$0xff]
    %v24 = vld [vmem:[#allocation2 + $0x18] sm:$0xff]
    %v25 = vld [vmem:[#allocation2 + $0x20] sm:$0xff]
    %v26 = vld [vmem:[#allocation2 + $0x28] sm:$0xff]
    %v27 = vld [vmem:[#allocation2 + $0x30] sm:$0xff]
    %v28 = vld [vmem:[#allocation2 + $0x38] sm:$0xff]
    %v29 = vmul.f32 %v21, 0.5
    %v30 = vmul.f32 %v22, 0.5
    %v31 = vmul.f32 %v23, 0.5
    %v32 = vmul.f32 %v24, 0.5
    %v33 = vmul.f32 %v25, 0.5
    %v34 = vmul.f32 %v26, 0.5
    %v35 = vmul.f32 %v27, 0.5
    %v36 = vmul.f32 %v28, 0.5
    %v37 = vtanh.pop %v29
    %v38 = vtanh.pop %v30
    %v39 = vtanh.pop %v31
    %v40 = vtanh.pop %v32
    %v41 = vtanh.pop %v33
    %v42 = vtanh.pop %v34
    %v43 = vtanh.pop %v35
    %v44 = vtanh.pop %v36
    %v45 = vadd.f32 %v37, 1.0
    %v46 = vadd.f32 %v38, 1.0
    %v47 = vadd.f32 %v39, 1.0
    %v48 = vadd.f32 %v40, 1.0
    %v49 = vadd.f32 %v41, 1.0
    %v50 = vadd.f32 %v42, 1.0
    %v51 = vadd.f32 %v43, 1.0
    %v52 = vadd.f32 %v44, 1.0
    %v53 = vmul.f32 %v45, 0.5
    %v54 = vmul.f32 %v46, 0.5
    %v55 = vmul.f32 %v47, 0.5
    %v56 = vmul.f32 %v48, 0.5
    %v57 = vmul.f32 %v49, 0.5
    %v58 = vmul.f32 %v50, 0.5
    %v59 = vmul.f32 %v51, 0.5
    %v60 = vmul.f32 %v52, 0.5
    %61 = vst [vmem:[#allocation5] sm:$0xff] %v53
    %62 = vst [vmem:[#allocation5 + $0x8] sm:$0xff] %v54
    %63 = vst [vmem:[#allocation5 + $0x10] sm:$0xff] %v55
    %64 = vst [vmem:[#allocation5 + $0x18] sm:$0xff] %v56
    %65 = vst [vmem:[#allocation5 + $0x20] sm:$0xff] %v57
    %66 = vst [vmem:[#allocation5 + $0x28] sm:$0xff] %v58
    %67 = vst [vmem:[#allocation5 + $0x30] sm:$0xff] %v59
    %68 = vst [vmem:[#allocation5 + $0x38] sm:$0xff] %v60
    // Predicated region
    $region10: #{tpu_custom_call.1} parent=1 // pred_check
      _
    $region11: #{tpu_custom_call.1} parent=1 // pred_check_branch
      %70 = sbr.rel (0) target = $region13
    $region12: #{tpu_custom_call.1} parent=1 // pred_region
      %s72 = ssub.s32 1024, 1024
      %73 = vsyncadd [#allocation4], %s72
      %s75 = sshll.u32 [#allocation5], 4
      %s76 = int_to_ptr.vmem [resolvable:$true] %s75
      %78 = dma.vmem_to_hbm [thread:$0]  %s76, 1024, %s1, [#allocation4]
    $region13: #{tpu_custom_call.1} parent=1 // pred_fallthru
      _
    // Predicated region
    $region14: #{tpu_custom_call.1} parent=1 // pred_check
      _
    $region15: #{tpu_custom_call.1} parent=1 // pred_check_branch
      %80 = sbr.rel (0) target = $region17
    $region16: #{tpu_custom_call.1} parent=1 // pred_region
      %81 = dma.done [#allocation4], 1024
    $region17: #{tpu_custom_call.1} parent=1 // pred_fallthru
      _
    %82 = vsyncpa [#allocation3], 1
    %83 = vsyncpa [#allocation4], 1

</llo_original>
